<compile_context>
chip_gen: v6e
topology: v6e:2x2x1
jax: 0.10.0
libtpu: 0.0.40
codegen_flags: <defaults>
</compile_context>

<pallas_src>
import jax
import jax.numpy as jnp
from jax.experimental import pallas as pl
from jax.experimental.pallas import tpu as pltpu


def nest_mlp_kernel(x_ref, w1_ref, b1_ref, w2_ref, b2_ref, w3_ref, b3_ref, ot_ref):
    # x_ref: (TILE_B, 20) bf16. Weights bf16, biases f32, accumulation f32.
    x = x_ref[...]

    # Hidden layer 1: Linear(20 -> 64) + ReLU (f32 accumulator).
    h1 = jnp.dot(x, w1_ref[...], preferred_element_type=jnp.float32) + b1_ref[...]
    h1 = jnp.maximum(h1, 0.0)

    # Hidden layer 2: Linear(64 -> 32) + ReLU.
    h2 = jnp.dot(h1.astype(w2_ref.dtype), w2_ref[...],
                 preferred_element_type=jnp.float32) + b2_ref[...]
    h2 = jnp.maximum(h2, 0.0)

    # Output layer: Linear(32 -> 16).
    out = jnp.dot(h2.astype(w3_ref.dtype), w3_ref[...],
                  preferred_element_type=jnp.float32) + b3_ref[...]

    # Lane-dense store: batch on the lane (minor) axis, 16 features on sublanes.
    ot_ref[...] = out.T.astype(ot_ref.dtype)


def nest_mlp(x, w1, b1, w2, b2, w3, b3, *, tile_b=512):
    """Fused MLP forward: y = relu(relu(x@w1+b1)@w2+b2)@w3+b3, returned as f32."""
    B, in_dim = x.shape
    h1_dim, h2_dim, out_dim = w1.shape[1], w2.shape[1], w3.shape[1]

    # Narrow the streamed/static operands to bf16; biases stay f32 (added to
    # the f32 accumulator inside the kernel).
    xb = x.astype(jnp.bfloat16)
    w1b, w2b, w3b = (w.astype(jnp.bfloat16) for w in (w1, w2, w3))
    b1f, b2f, b3f = (b.astype(jnp.float32) for b in (b1, b2, b3))

    # Batch tile: full batch when small (block == full dims satisfies the
    # (8,128) rule), otherwise 512 rows (multiple of 8/16/128).
    tb = B if B <= tile_b else tile_b
    grid = (pl.cdiv(B, tb),)

    # Weights/biases: one constant block -> stays VMEM-resident across steps.
    const = lambda arr: pl.BlockSpec(arr.shape, lambda i: (0,) * arr.ndim)

    flops = 2 * B * (in_dim * h1_dim + h1_dim * h2_dim + h2_dim * out_dim)
    bytes_accessed = (
        xb.size * 2
        + (w1b.size + w2b.size + w3b.size) * 2
        + (b1f.size + b2f.size + b3f.size) * 4
        + B * out_dim * 4
    )

    out_t = pl.pallas_call(
        nest_mlp_kernel,
        out_shape=jax.ShapeDtypeStruct((out_dim, B), jnp.float32),
        grid_spec=pltpu.PrefetchScalarGridSpec(
            num_scalar_prefetch=0,
            grid=grid,
            in_specs=[
                pl.BlockSpec((tb, in_dim), lambda i: (i, 0)),   # x: streamed over batch
                const(w1b), const(b1f),
                const(w2b), const(b2f),
                const(w3b), const(b3f),
            ],
            out_specs=pl.BlockSpec((out_dim, tb), lambda i: (0, i)),  # lane-dense
        ),
        compiler_params=pltpu.CompilerParams(
            dimension_semantics=("parallel",),   # megacore sharding on v7x
        ),
        cost_estimate=pl.CostEstimate(
            flops=flops, transcendentals=0, bytes_accessed=bytes_accessed
        ),
    )(xb, w1b, b1f, w2b, b2f, w3b, b3f)

    # Undo the transposed kernel layout (layout plumbing only).
    return out_t.T


def init_params(key):
    """Deterministic init mimicking PyTorch Lazy/Linear default
    (uniform(-1/sqrt(fan_in), 1/sqrt(fan_in)))."""
    dims = [(20, 64), (64, 32), (32, 16)]
    params = []
    for fan_in, fan_out in dims:
        key, kw, kb = jax.random.split(key, 3)
        bound = 1.0 / jnp.sqrt(fan_in)
        w = jax.random.uniform(kw, (fan_in, fan_out), jnp.float32, -bound, bound)
        b = jax.random.uniform(kb, (1, fan_out), jnp.float32, -bound, bound)
        params += [w, b]
    return params


def reference_forward(x, w1, b1, w2, b2, w3, b3):
    """Pure-JAX reference mirroring the kernel's bf16-in / f32-accumulate math."""
    xb = x.astype(jnp.bfloat16)
    w1b, w2b, w3b = (w.astype(jnp.bfloat16) for w in (w1, w2, w3))
    h1 = jnp.maximum(jnp.dot(xb, w1b, preferred_element_type=jnp.float32) + b1, 0.0)
    h2 = jnp.maximum(
        jnp.dot(h1.astype(jnp.bfloat16), w2b, preferred_element_type=jnp.float32) + b2, 0.0)
    return jnp.dot(h2.astype(jnp.bfloat16), w3b, preferred_element_type=jnp.float32) + b3


if __name__ == "__main__":
    key = jax.random.PRNGKey(0)
    key, kx, kx_big = jax.random.split(key, 3)
    w1, b1, w2, b2, w3, b3 = init_params(key)

    # Matches `X = torch.rand(2, 20)` — uniform [0, 1), batch=2, features=20.
    x = jax.random.uniform(kx, (2, 20), jnp.float32)
    out = jax.block_until_ready(nest_mlp(x, w1, b1, w2, b2, w3, b3))
    ref = reference_forward(x, w1, b1, w2, b2, w3, b3)
    assert out.shape == (2, 16), out.shape
    assert jnp.allclose(out, ref, atol=1e-3, rtol=1e-3), "mismatch vs reference (B=2)"

    # Second check exercising the batch-tiled grid path (2 pipelined steps).
    x_big = jax.random.uniform(kx_big, (1024, 20), jnp.float32)
    out_big = jax.block_until_ready(nest_mlp(x_big, w1, b1, w2, b2, w3, b3))
    ref_big = reference_forward(x_big, w1, b1, w2, b2, w3, b3)
    assert out_big.shape == (1024, 16), out_big.shape
    assert jnp.allclose(out_big, ref_big, atol=1e-3, rtol=1e-3), "mismatch vs reference (B=1024)"

    print("KERNEL_OK")
</pallas_src>

<mosaic_0001>
module attributes {stable_mosaic.version = 11 : i64} {
  func.func @nest_mlp_kernel(%arg0: i32, %arg1: memref<2x20xbf16, #tpu.memory_space<vmem>>, %arg2: memref<20x64xbf16, #tpu.memory_space<vmem>>, %arg3: memref<1x64xf32, #tpu.memory_space<vmem>>, %arg4: memref<64x32xbf16, #tpu.memory_space<vmem>>, %arg5: memref<1x32xf32, #tpu.memory_space<vmem>>, %arg6: memref<32x16xbf16, #tpu.memory_space<vmem>>, %arg7: memref<1x16xf32, #tpu.memory_space<vmem>>, %arg8: memref<16x2xf32, #tpu.memory_space<vmem>>) attributes {dimension_semantics = [#tpu.dimension_semantics<parallel>], iteration_bounds = array<i64: 1>, scalar_prefetch = 0 : i64, scratch_operands = 0 : i64, tpu.core_type = #tpu.core_type<tc>, window_params = [{transform_indices = @transform_0, window_bounds = array<i64: 2, 20>}, {pipeline_mode = #tpu.pipeline_mode<synchronous>, transform_indices = @transform_1, window_bounds = array<i64: 20, 64>}, {pipeline_mode = #tpu.pipeline_mode<synchronous>, transform_indices = @transform_2, window_bounds = array<i64: 1, 64>}, {pipeline_mode = #tpu.pipeline_mode<synchronous>, transform_indices = @transform_3, window_bounds = array<i64: 64, 32>}, {pipeline_mode = #tpu.pipeline_mode<synchronous>, transform_indices = @transform_4, window_bounds = array<i64: 1, 32>}, {pipeline_mode = #tpu.pipeline_mode<synchronous>, transform_indices = @transform_5, window_bounds = array<i64: 32, 16>}, {pipeline_mode = #tpu.pipeline_mode<synchronous>, transform_indices = @transform_6, window_bounds = array<i64: 1, 16>}, {transform_indices = @transform_7, window_bounds = array<i64: 16, 2>}]} {
    %c0 = arith.constant 0 : index
    %c0_0 = arith.constant 0 : index
    %0 = vector.load %arg1[%c0, %c0_0] : memref<2x20xbf16, #tpu.memory_space<vmem>>, vector<2x20xbf16>
    %c0_1 = arith.constant 0 : index
    %c0_2 = arith.constant 0 : index
    %1 = vector.load %arg2[%c0_1, %c0_2] : memref<20x64xbf16, #tpu.memory_space<vmem>>, vector<20x64xbf16>
    %cst = arith.constant dense<0.000000e+00> : vector<2x64xf32>
    %2 = tpu.matmul %0, %1, %cst {dimension_numbers = #tpu.dot_dimension_numbers<[1], [0], [0], [1], [0, 0, 1, 1], [], []>} : vector<2x20xbf16>, vector<20x64xbf16>, vector<2x64xf32> -> vector<2x64xf32>
    %c0_3 = arith.constant 0 : index
    %c0_4 = arith.constant 0 : index
    %3 = vector.load %arg3[%c0_3, %c0_4] : memref<1x64xf32, #tpu.memory_space<vmem>>, vector<1x64xf32>
    %4 = vector.broadcast %3 : vector<1x64xf32> to vector<2x64xf32>
    %5 = arith.addf %2, %4 : vector<2x64xf32>
    %cst_5 = arith.constant 0.000000e+00 : f32
    %6 = vector.broadcast %cst_5 : f32 to vector<2x64xf32>
    %7 = arith.maximumf %5, %6 : vector<2x64xf32>
    %8 = arith.truncf %7 : vector<2x64xf32> to vector<2x64xbf16>
    %c0_6 = arith.constant 0 : index
    %c0_7 = arith.constant 0 : index
    %9 = vector.load %arg4[%c0_6, %c0_7] : memref<64x32xbf16, #tpu.memory_space<vmem>>, vector<64x32xbf16>
    %cst_8 = arith.constant dense<0.000000e+00> : vector<2x32xf32>
    %10 = tpu.matmul %8, %9, %cst_8 {dimension_numbers = #tpu.dot_dimension_numbers<[1], [0], [0], [1], [0, 0, 1, 1], [], []>} : vector<2x64xbf16>, vector<64x32xbf16>, vector<2x32xf32> -> vector<2x32xf32>
    %c0_9 = arith.constant 0 : index
    %c0_10 = arith.constant 0 : index
    %11 = vector.load %arg5[%c0_9, %c0_10] : memref<1x32xf32, #tpu.memory_space<vmem>>, vector<1x32xf32>
    %12 = vector.broadcast %11 : vector<1x32xf32> to vector<2x32xf32>
    %13 = arith.addf %10, %12 : vector<2x32xf32>
    %cst_11 = arith.constant 0.000000e+00 : f32
    %14 = vector.broadcast %cst_11 : f32 to vector<2x32xf32>
    %15 = arith.maximumf %13, %14 : vector<2x32xf32>
    %16 = arith.truncf %15 : vector<2x32xf32> to vector<2x32xbf16>
    %c0_12 = arith.constant 0 : index
    %c0_13 = arith.constant 0 : index
    %17 = vector.load %arg6[%c0_12, %c0_13] : memref<32x16xbf16, #tpu.memory_space<vmem>>, vector<32x16xbf16>
    %cst_14 = arith.constant dense<0.000000e+00> : vector<2x16xf32>
    %18 = tpu.matmul %16, %17, %cst_14 {dimension_numbers = #tpu.dot_dimension_numbers<[1], [0], [0], [1], [0, 0, 1, 1], [], []>} : vector<2x32xbf16>, vector<32x16xbf16>, vector<2x16xf32> -> vector<2x16xf32>
    %c0_15 = arith.constant 0 : index
    %c0_16 = arith.constant 0 : index
    %19 = vector.load %arg7[%c0_15, %c0_16] : memref<1x16xf32, #tpu.memory_space<vmem>>, vector<1x16xf32>
    %20 = vector.broadcast %19 : vector<1x16xf32> to vector<2x16xf32>
    %21 = arith.addf %18, %20 : vector<2x16xf32>
    %22 = tpu.transpose %21, [1, 0] : vector<2x16xf32> -> vector<16x2xf32>
    %c0_17 = arith.constant 0 : index
    %c0_18 = arith.constant 0 : index
    %23 = vector.load %arg8[%c0_17, %c0_18] : memref<16x2xf32, #tpu.memory_space<vmem>>, vector<16x2xf32>
    tpu.vector_store %arg8[%c0_17, %c0_18], %22 {strides = array<i32>} : memref<16x2xf32, #tpu.memory_space<vmem>>, vector<16x2xf32>,
    return
  }
  func.func @transform_0(%arg0: i32) -> (i32, i32) {
    %c0_i32 = arith.constant 0 : i32
    %c0_i32_0 = arith.constant 0 : i32
    return %arg0, %c0_i32 : i32, i32
  }
  func.func @transform_1(%arg0: i32) -> (i32, i32) {
    %c0_i32 = arith.constant 0 : i32
    %c0_i32_0 = arith.constant 0 : i32
    %c0_i32_1 = arith.constant 0 : i32
    return %c0_i32, %c0_i32_0 : i32, i32
  }
  func.func @transform_2(%arg0: i32) -> (i32, i32) {
    %c0_i32 = arith.constant 0 : i32
    %c0_i32_0 = arith.constant 0 : i32
    %c0_i32_1 = arith.constant 0 : i32
    return %c0_i32, %c0_i32_0 : i32, i32
  }
  func.func @transform_3(%arg0: i32) -> (i32, i32) {
    %c0_i32 = arith.constant 0 : i32
    %c0_i32_0 = arith.constant 0 : i32
    %c0_i32_1 = arith.constant 0 : i32
    return %c0_i32, %c0_i32_0 : i32, i32
  }
  func.func @transform_4(%arg0: i32) -> (i32, i32) {
    %c0_i32 = arith.constant 0 : i32
    %c0_i32_0 = arith.constant 0 : i32
    %c0_i32_1 = arith.constant 0 : i32
    return %c0_i32, %c0_i32_0 : i32, i32
  }
  func.func @transform_5(%arg0: i32) -> (i32, i32) {
    %c0_i32 = arith.constant 0 : i32
    %c0_i32_0 = arith.constant 0 : i32
    %c0_i32_1 = arith.constant 0 : i32
    return %c0_i32, %c0_i32_0 : i32, i32
  }
  func.func @transform_6(%arg0: i32) -> (i32, i32) {
    %c0_i32 = arith.constant 0 : i32
    %c0_i32_0 = arith.constant 0 : i32
    %c0_i32_1 = arith.constant 0 : i32
    return %c0_i32, %c0_i32_0 : i32, i32
  }
  func.func @transform_7(%arg0: i32) -> (i32, i32) {
    %c0_i32 = arith.constant 0 : i32
    %c0_i32_0 = arith.constant 0 : i32
    return %c0_i32, %arg0 : i32, i32
  }
}

</mosaic_0001>

<llo_original>
// kernel: tpu_custom_call.1
$region0: #{tpu_custom_call.1}
  #allocation0 [shape = 'u32[]', space=smem, size = 0x4, offset = 0x4, fixed_abs, tag = 'smem constant byte address 0x4 - core index']
  #allocation1 [shape = 'u32[144,128]{1,0:T(1,128)}', space=vmem, size = 0x12000, scoped, tag = 'internal scratch']
  %s0 = inlined_call_operand.vmem [shape: bf16[2,20], index: 0, kind: input, shape index: {}]
  %s1 = inlined_call_operand.vmem [shape: bf16[20,64], index: 1, kind: input, shape index: {}]
  %s2 = inlined_call_operand.vmem [shape: f32[1,64], index: 2, kind: input, shape index: {}]
  %s3 = inlined_call_operand.vmem [shape: bf16[64,32], index: 3, kind: input, shape index: {}]
  %s4 = inlined_call_operand.vmem [shape: f32[1,32], index: 4, kind: input, shape index: {}]
  %s5 = inlined_call_operand.vmem [shape: bf16[32,16], index: 5, kind: input, shape index: {}]
  %s6 = inlined_call_operand.vmem [shape: f32[1,16], index: 6, kind: input, shape index: {}]
  %s7 = inlined_call_operand.vmem [shape: f32[16,2], index: 7, kind: output, shape index: {}]
  %s8 = sld [smem:[#allocation0]]
  $region38: #{tpu_custom_call.1} parent=0
    _
  %s10 = ssub.s32 1, %s8
  %s11 = scalar_select 0, %s10, %s8
  // Predicated region
  $region2: #{tpu_custom_call.1} parent=0 // pred_check
    _
  $region3: #{tpu_custom_call.1} parent=0 // pred_check_branch
    %13 = sbr.rel (0) target = $region5
  $region4: #{tpu_custom_call.1} parent=0 // pred_region
    _
  $region5: #{tpu_custom_call.1} parent=0 // pred_fallthru
    _
  // Predicated region
  $region6: #{tpu_custom_call.1} parent=0 // pred_check
    _
  $region7: #{tpu_custom_call.1} parent=0 // pred_check_branch
    %15 = sbr.rel (0) target = $region9
  $region8: #{tpu_custom_call.1} parent=0 // pred_region
    _
  $region9: #{tpu_custom_call.1} parent=0 // pred_fallthru
    _
  // Predicated region
  $region10: #{tpu_custom_call.1} parent=0 // pred_check
    _
  $region11: #{tpu_custom_call.1} parent=0 // pred_check_branch
    %17 = sbr.rel (0) target = $region13
  $region12: #{tpu_custom_call.1} parent=0 // pred_region
    _
  $region13: #{tpu_custom_call.1} parent=0 // pred_fallthru
    _
  // Predicated region
  $region14: #{tpu_custom_call.1} parent=0 // pred_check
    _
  $region15: #{tpu_custom_call.1} parent=0 // pred_check_branch
    %19 = sbr.rel (0) target = $region17
  $region16: #{tpu_custom_call.1} parent=0 // pred_region
    _
  $region17: #{tpu_custom_call.1} parent=0 // pred_fallthru
    _
  // Predicated region
  $region18: #{tpu_custom_call.1} parent=0 // pred_check
    _
  $region19: #{tpu_custom_call.1} parent=0 // pred_check_branch
    %21 = sbr.rel (0) target = $region21
  $region20: #{tpu_custom_call.1} parent=0 // pred_region
    _
  $region21: #{tpu_custom_call.1} parent=0 // pred_fallthru
    _
  // Predicated region
  $region22: #{tpu_custom_call.1} parent=0 // pred_check
    _
  $region23: #{tpu_custom_call.1} parent=0 // pred_check_branch
    %23 = sbr.rel (0) target = $region25
  $region24: #{tpu_custom_call.1} parent=0 // pred_region
    _
  $region25: #{tpu_custom_call.1} parent=0 // pred_fallthru
    _
  // Predicated region
  $region26: #{tpu_custom_call.1} parent=0 // pred_check
    _
  $region27: #{tpu_custom_call.1} parent=0 // pred_check_branch
    %25 = sbr.rel (0) target = $region29
  $region28: #{tpu_custom_call.1} parent=0 // pred_region
    _
  $region29: #{tpu_custom_call.1} parent=0 // pred_fallthru
    _
  %v27 = vld [vmem:[%s0] sm:$0x1]
  %v28 = vld [vmem:[%s1] sm:$0xf]
  %v29 = vld [vmem:[%s1 + $0x4] sm:$0xf]
  %v30 = vld [vmem:[%s1 + $0x8] sm:$0x3]
  %v31 = vld [vmem:[%s2] sm:$0x1]
  %v33 = vlaneseq
  %v34 = vshrl.u32 %v33, 7
  %v35 = vsub.s32 0, %v34
  %v36 = vrot.slane %v31, %v35
  %v41 = vunpack.c.l.b16 %v28
  %v42 = vunpack.c.l.b16 %v29
  %v43 = vunpack.c.l.b16 %v30
  %v44 = vpack.c.b16 %v42, %v41
  %v45 = vpack.c.b16 %v43, %v43
  %vm47 = vcmask 162816
  %v49 = vsel %vm47, %v27, 0
  %vm51 = vcmask 1041408
  %v53 = vsel %vm51, %v45, 0
  %55 = vmatprep.subr.bf16.mxu0 0
  %56 = vmatpush1.bf16.msra.mxu0 0
  %57 = vmatprep.subr.bf16.mxu0 0
  %58 = vmatpush1.bf16.msra.mxu0 0
  %59 = vmatprep.subr.bf16.mxu0 0
  %60 = vmatpush1.bf16.msra.mxu0 0
  %61 = vmatprep.subr.bf16.mxu0 0
  %62 = vmatpush1.bf16.msra.mxu0 0
  %63 = vmatprep.subr.bf16.mxu0 0
  %64 = vmatpush1.bf16.msra.mxu0 0
  %65 = vmatprep.subr.bf16.mxu0 0
  %66 = vmatpush1.bf16.msra.mxu0 0
  %67 = vmatprep.subr.bf16.mxu0 0
  %68 = vmatpush1.bf16.msra.mxu0 %v53
  %69 = vmatprep.subr.bf16.mxu0 0
  %70 = vmatpush1.bf16.msra.mxu0 %v44
  %71 = vmatprep.subr.bf16.mxu0 0
  %72 = vmatpush2.bf16.msra.mxu0 0
  %73 = vmatprep.subr.bf16.mxu0 0
  %74 = vmatpush2.bf16.msra.mxu0 0
  %75 = vmatprep.subr.bf16.mxu0 0
  %76 = vmatpush2.bf16.msra.mxu0 0
  %77 = vmatprep.subr.bf16.mxu0 0
  %78 = vmatpush2.bf16.msra.mxu0 0
  %79 = vmatprep.subr.bf16.mxu0 0
  %80 = vmatpush2.bf16.msra.mxu0 0
  %81 = vmatprep.subr.bf16.mxu0 0
  %82 = vmatpush2.bf16.msra.mxu0 0
  %83 = vmatprep.subr.bf16.mxu0 0
  %84 = vmatpush2.bf16.msra.mxu0 0
  %85 = vmatprep.subr.bf16.mxu0 0
  %86 = vmatpush2.bf16.msra.mxu0 0
  %87 = vmatprep.mubr.bf16.mxu0 0
  %88 = vmatmul.mubr.bf16.gmra.mxu0 %v49
  %v89 = vpop.f32.mrf.mxu0
  %v90 = vadd.f32 %v36, %v89
  %v91 = vpop.f32.mrf.mxu0
  %v92 = vpop.f32.mrf.mxu0
  %v93 = vpop.f32.mrf.mxu0
  %94 = vdwg.mxu0
  %v95 = vmax.f32 %v90, 0.0
  %v96 = vpack.c.bf16 %v95, %v95
  %v97 = vld [vmem:[%s3] sm:$0xf]
  %v98 = vld [vmem:[%s3 + $0x4] sm:$0xf]
  %v99 = vld [vmem:[%s3 + $0x8] sm:$0xf]
  %v100 = vld [vmem:[%s3 + $0xc] sm:$0xf]
  %v101 = vld [vmem:[%s3 + $0x10] sm:$0xf]
  %v102 = vld [vmem:[%s3 + $0x14] sm:$0xf]
  %v103 = vld [vmem:[%s3 + $0x18] sm:$0xf]
  %v104 = vld [vmem:[%s3 + $0x1c] sm:$0xf]
  %v105 = vld [vmem:[%s4] sm:$0x1]
  %v107 = vlaneseq
  %v108 = vshrl.u32 %v107, 7
  %v109 = vsub.s32 0, %v108
  %v110 = vrot.slane %v105, %v109
  %v120 = vunpack.c.l.b16 %v97
  %v121 = vunpack.c.l.b16 %v98
  %v122 = vunpack.c.l.b16 %v99
  %v123 = vunpack.c.l.b16 %v100
  %v124 = vunpack.c.l.b16 %v101
  %v125 = vunpack.c.l.b16 %v102
  %v126 = vunpack.c.l.b16 %v103
  %v127 = vunpack.c.l.b16 %v104
  %v128 = vpack.c.b16 %v121, %v120
  %v129 = vpack.c.b16 %v123, %v122
  %v130 = vpack.c.b16 %v125, %v124
  %v131 = vpack.c.b16 %v127, %v126
  %vm136 = vcmask 523264
  %v138 = vsel %vm136, %v96, 0
  %140 = vmatprep.subr.bf16.mxu0 0
  %141 = vmatpush1.bf16.msra.mxu0 0
  %142 = vmatprep.subr.bf16.mxu0 0
  %143 = vmatpush1.bf16.msra.mxu0 0
  %144 = vmatprep.subr.bf16.mxu0 0
  %145 = vmatpush1.bf16.msra.mxu0 0
  %146 = vmatprep.subr.bf16.mxu0 0
  %147 = vmatpush1.bf16.msra.mxu0 0
  %148 = vmatprep.subr.bf16.mxu0 0
  %149 = vmatpush1.bf16.msra.mxu0 %v131
  %150 = vmatprep.subr.bf16.mxu0 0
  %151 = vmatpush1.bf16.msra.mxu0 %v130
  %152 = vmatprep.subr.bf16.mxu0 0
  %153 = vmatpush1.bf16.msra.mxu0 %v129
  %154 = vmatprep.subr.bf16.mxu0 0
  %155 = vmatpush1.bf16.msra.mxu0 %v128
  %156 = vmatprep.subr.bf16.mxu0 0
  %157 = vmatpush2.bf16.msra.mxu0 0
  %158 = vmatprep.subr.bf16.mxu0 0
  %159 = vmatpush2.bf16.msra.mxu0 0
  %160 = vmatprep.subr.bf16.mxu0 0
  %161 = vmatpush2.bf16.msra.mxu0 0
  %162 = vmatprep.subr.bf16.mxu0 0
  %163 = vmatpush2.bf16.msra.mxu0 0
  %164 = vmatprep.subr.bf16.mxu0 0
  %165 = vmatpush2.bf16.msra.mxu0 0
  %166 = vmatprep.subr.bf16.mxu0 0
  %167 = vmatpush2.bf16.msra.mxu0 0
  %168 = vmatprep.subr.bf16.mxu0 0
  %169 = vmatpush2.bf16.msra.mxu0 0
  %170 = vmatprep.subr.bf16.mxu0 0
  %171 = vmatpush2.bf16.msra.mxu0 0
  %172 = vmatprep.mubr.bf16.mxu0 0
  %173 = vmatmul.mubr.bf16.gmra.mxu0 %v138
  %v174 = vpop.f32.mrf.mxu0
  %v175 = vadd.f32 %v110, %v174
  %v176 = vpop.f32.mrf.mxu0
  %v177 = vpop.f32.mrf.mxu0
  %v178 = vpop.f32.mrf.mxu0
  %179 = vdwg.mxu0
  %v180 = vmax.f32 %v175, 0.0
  %v181 = vpack.c.bf16 %v180, %v180
  %v182 = vld [vmem:[%s5] sm:$0xf]
  %v183 = vld [vmem:[%s5 + $0x4] sm:$0xf]
  %v184 = vld [vmem:[%s5 + $0x8] sm:$0xf]
  %v185 = vld [vmem:[%s5 + $0xc] sm:$0xf]
  %v186 = vld [vmem:[%s6] sm:$0x1]
  %v188 = vlaneseq
  %v189 = vshrl.u32 %v188, 7
  %v190 = vsub.s32 0, %v189
  %v191 = vrot.slane %v186, %v190
  %v197 = vunpack.c.l.b16 %v182
  %v198 = vunpack.c.l.b16 %v183
  %v199 = vunpack.c.l.b16 %v184
  %v200 = vunpack.c.l.b16 %v185
  %v201 = vpack.c.b16 %v198, %v197
  %v202 = vpack.c.b16 %v200, %v199
  %vm205 = vcmask 261120
  %v207 = vsel %vm205, %v181, 0
  %209 = vmatprep.subr.bf16.mxu0 0
  %210 = vmatpush1.bf16.msra.mxu0 0
  %211 = vmatprep.subr.bf16.mxu0 0
  %212 = vmatpush1.bf16.msra.mxu0 0
  %213 = vmatprep.subr.bf16.mxu0 0
  %214 = vmatpush1.bf16.msra.mxu0 0
  %215 = vmatprep.subr.bf16.mxu0 0
  %216 = vmatpush1.bf16.msra.mxu0 0
  %217 = vmatprep.subr.bf16.mxu0 0
  %218 = vmatpush1.bf16.msra.mxu0 0
  %219 = vmatprep.subr.bf16.mxu0 0
  %220 = vmatpush1.bf16.msra.mxu0 0
  %221 = vmatprep.subr.bf16.mxu0 0
  %222 = vmatpush1.bf16.msra.mxu0 %v202
  %223 = vmatprep.subr.bf16.mxu0 0
  %224 = vmatpush1.bf16.msra.mxu0 %v201
  %225 = vmatprep.subr.bf16.mxu0 0
  %226 = vmatpush2.bf16.msra.mxu0 0
  %227 = vmatprep.subr.bf16.mxu0 0
  %228 = vmatpush2.bf16.msra.mxu0 0
  %229 = vmatprep.subr.bf16.mxu0 0
  %230 = vmatpush2.bf16.msra.mxu0 0
  %231 = vmatprep.subr.bf16.mxu0 0
  %232 = vmatpush2.bf16.msra.mxu0 0
  %233 = vmatprep.subr.bf16.mxu0 0
  %234 = vmatpush2.bf16.msra.mxu0 0
  %235 = vmatprep.subr.bf16.mxu0 0
  %236 = vmatpush2.bf16.msra.mxu0 0
  %237 = vmatprep.subr.bf16.mxu0 0
  %238 = vmatpush2.bf16.msra.mxu0 0
  %239 = vmatprep.subr.bf16.mxu0 0
  %240 = vmatpush2.bf16.msra.mxu0 0
  %241 = vmatprep.mubr.bf16.mxu0 0
  %242 = vmatmul.mubr.bf16.gmra.mxu0 %v207
  %v243 = vpop.f32.mrf.mxu0
  %v244 = vadd.f32 %v191, %v243
  %v245 = vpop.f32.mrf.mxu0
  %v246 = vpop.f32.mrf.mxu0
  %v247 = vpop.f32.mrf.mxu0
  %248 = vdwg.mxu0
  %249 = vxpose.xlu0.b32.start [1/16] %v244, 128
  %250 = vxpose.xlu0.b32.cont [2/16] 0.0, 128
  %251 = vxpose.xlu0.b32.cont [3/16] 0.0, 128
  %252 = vxpose.xlu0.b32.cont [4/16] 0.0, 128
  %253 = vxpose.xlu0.b32.cont [5/16] 0.0, 128
  %254 = vxpose.xlu0.b32.cont [6/16] 0.0, 128
  %255 = vxpose.xlu0.b32.cont [7/16] 0.0, 128
  %256 = vxpose.xlu0.b32.cont [8/16] 0.0, 128
  %257 = vxpose.xlu0.b32.cont [9/16] 0.0, 128
  %258 = vxpose.xlu0.b32.cont [10/16] 0.0, 128
  %259 = vxpose.xlu0.b32.cont [11/16] 0.0, 128
  %260 = vxpose.xlu0.b32.cont [12/16] 0.0, 128
  %261 = vxpose.xlu0.b32.cont [13/16] 0.0, 128
  %262 = vxpose.xlu0.b32.cont [14/16] 0.0, 128
  %263 = vxpose.xlu0.b32.cont [15/16] 0.0, 128
  %264 = vxpose.xlu0.b32.end [16/16] 0.0, 128
  %v265 = vpop.trf.xlu0
  %v266 = vpop.trf.xlu0
  %v267 = vpop.trf.xlu0
  %v268 = vpop.trf.xlu0
  %v269 = vpop.trf.xlu0
  %v270 = vpop.trf.xlu0
  %v271 = vpop.trf.xlu0
  %v272 = vpop.trf.xlu0
  %v273 = vpop.trf.xlu0
  %v274 = vpop.trf.xlu0
  %v275 = vpop.trf.xlu0
  %v276 = vpop.trf.xlu0
  %v277 = vpop.trf.xlu0
  %v278 = vpop.trf.xlu0
  %v279 = vpop.trf.xlu0
  %v280 = vpop.trf.xlu0
  %vm281 = vcmask 15360
  %282 = vst.msk [vmem:[%s7] sm:$0xff] %vm281, %v265
  %283 = vst.msk [vmem:[%s7 + $0x8] sm:$0xff] %vm281, %v266
  // Predicated region
  $region30: #{tpu_custom_call.1} parent=0 // pred_check
    _
  $region31: #{tpu_custom_call.1} parent=0 // pred_check_branch
    %285 = sbr.rel (0) target = $region33
  $region32: #{tpu_custom_call.1} parent=0 // pred_region
    _
  $region33: #{tpu_custom_call.1} parent=0 // pred_fallthru
    _
  // Predicated region
  $region34: #{tpu_custom_call.1} parent=0 // pred_check
    _
  $region35: #{tpu_custom_call.1} parent=0 // pred_check_branch
    %287 = sbr.rel (0) target = $region37
  $region36: #{tpu_custom_call.1} parent=0 // pred_region
    _
  $region37: #{tpu_custom_call.1} parent=0 // pred_fallthru
    _

</llo_original>
